<compile_context>
chip_gen: v5e
topology: v5e:2x2
jax: 0.10.0
libtpu: 0.0.40
codegen_flags: <defaults>
</compile_context>

<pallas_src>
import functools

import jax
import jax.numpy as jnp
from jax.experimental import pallas as pl
from jax.experimental.pallas import tpu as pltpu


def _vae_encoder_kernel(x_ref, w1_ref, b1_ref, w2_ref, b2_ref,
                        w34_ref, b34_ref, noise_ref,
                        z_ref, kl_ref, *, latent_dims):
    # linear1 + relu : [TB,256] @ [256,128] + [1,128]
    h1 = jnp.dot(x_ref[...], w1_ref[...], preferred_element_type=jnp.float32)
    h1 = jnp.maximum(h1 + b1_ref[...], 0.0).astype(w2_ref.dtype)  # no-op cast in f32

    # linear2 + relu : [TB,128] @ [128,64] + [1,64]
    h2 = jnp.dot(h1, w2_ref[...], preferred_element_type=jnp.float32)
    h2 = jnp.maximum(h2 + b2_ref[...], 0.0).astype(w34_ref.dtype)

    # fused mu / log_sigma heads : [TB,64] @ [64,2L] + [1,2L], then lane-slice
    h34 = jnp.dot(h2, w34_ref[...], preferred_element_type=jnp.float32) + b34_ref[...]
    mu = h34[:, :latent_dims]
    log_sigma = h34[:, latent_dims:]
    sigma = jnp.exp(log_sigma)

    # reparameterization: z = mu + sigma * eps
    z_ref[...] = (mu + sigma * noise_ref[...]).astype(z_ref.dtype)

    # per-row KL partials: sum_L(sigma^2 + mu^2 - log_sigma - 1/2)
    # (uses log_sigma directly; log(exp(x)) == x and avoids -inf on underflow)
    kl_ref[...] = jnp.sum(sigma * sigma + mu * mu - log_sigma - 0.5,
                          axis=-1, keepdims=True)


def variational_encoder_forward(x, params, noise, *,
                                block_batch=512,
                                compute_dtype=jnp.float32):
    """x: [B, 256]; noise: [B, latent]. Returns (z [B, latent], kl scalar).

    block_batch: batch rows per grid step (pick >=256 on v6e/v7x, >=128 on v5e
    for MXU fill; kept small in the demo below to exercise the grid).
    compute_dtype: jnp.float32 (default, exact) or jnp.bfloat16 (halves HBM
    bytes for the x stream / doubles MXU rate on v6e/v7x; accumulation stays f32).
    """
    B, in_dim = x.shape
    latent = params["w3"].shape[1]

    # Pre-fuse the two head weights/biases into one matmul.
    w1 = params["w1"].astype(compute_dtype)
    w2 = params["w2"].astype(compute_dtype)
    w34 = jnp.concatenate([params["w3"], params["w4"]], axis=1).astype(compute_dtype)
    b1 = params["b1"].astype(jnp.float32)
    b2 = params["b2"].astype(jnp.float32)
    b34 = jnp.concatenate([params["b3"], params["b4"]], axis=1).astype(jnp.float32)
    x_c = x.astype(compute_dtype)
    noise = noise.astype(jnp.float32)

    tb = min(block_batch, B)              # tb == B (full) or a multiple of 8
    grid = (pl.cdiv(B, tb),)

    batch_spec = lambda shape: pl.BlockSpec(shape, lambda i: (i, 0))
    const_spec = lambda arr: pl.BlockSpec(arr.shape, lambda i: (0, 0))

    kernel = functools.partial(_vae_encoder_kernel, latent_dims=latent)

    z, kl_rows = pl.pallas_call(
        kernel,
        grid=grid,
        out_shape=(
            jax.ShapeDtypeStruct((B, latent), jnp.float32),
            jax.ShapeDtypeStruct((B, 1), jnp.float32),
        ),
        in_specs=[
            batch_spec((tb, in_dim)),      # x: tiled over batch
            const_spec(w1), const_spec(b1),
            const_spec(w2), const_spec(b2),
            const_spec(w34), const_spec(b34),
            batch_spec((tb, latent)),      # noise: tiled over batch
        ],
        out_specs=(
            batch_spec((tb, latent)),      # z
            batch_spec((tb, 1)),           # per-row KL partials
        ),
        compiler_params=pltpu.CompilerParams(
            dimension_semantics=("parallel",),   # v7x: shard batch over 2 TCs
        ),
    )(x_c, w1, b1, w2, b2, w34, b34, noise)

    return z, jnp.sum(kl_rows)


def init_params(key, latent_dims):
    """Torch-Linear-like uniform init; weights stored pre-transposed [in, out],
    biases as [1, out]."""
    def linear(key, fan_in, fan_out):
        kw, kb = jax.random.split(key)
        bound = 1.0 / jnp.sqrt(fan_in)
        w = jax.random.uniform(kw, (fan_in, fan_out), jnp.float32, -bound, bound)
        b = jax.random.uniform(kb, (1, fan_out), jnp.float32, -bound, bound)
        return w, b

    k1, k2, k3, k4 = jax.random.split(key, 4)
    w1, b1 = linear(k1, 256, 128)
    w2, b2 = linear(k2, 128, 64)
    w3, b3 = linear(k3, 64, latent_dims)
    w4, b4 = linear(k4, 64, latent_dims)
    return dict(w1=w1, b1=b1, w2=w2, b2=b2, w3=w3, b3=b3, w4=w4, b4=b4)


def reference_forward(x, params, noise):
    h1 = jax.nn.relu(x @ params["w1"] + params["b1"])
    h2 = jax.nn.relu(h1 @ params["w2"] + params["b2"])
    mu = h2 @ params["w3"] + params["b3"]
    sigma = jnp.exp(h2 @ params["w4"] + params["b4"])
    z = mu + sigma * noise
    kl = jnp.sum(sigma ** 2 + mu ** 2 - jnp.log(sigma) - 0.5)
    return z, kl


if __name__ == "__main__":
    key = jax.random.PRNGKey(0)
    k_param, k_x, k_noise = jax.random.split(key, 3)

    batch = 64
    latent_dims = 8

    params = init_params(k_param, latent_dims)
    x = jax.random.normal(k_x, (batch, 256), jnp.float32)
    # TODO(synk): torch.distributions.Normal sampling happens inside the torch
    # module; here Gaussian noise is drawn with jax.random and passed in.
    noise = jax.random.normal(k_noise, (batch, latent_dims), jnp.float32)

    # Small block_batch so the batch grid (4 steps) is actually exercised.
    z, kl = variational_encoder_forward(x, params, noise, block_batch=16)
    z = jax.block_until_ready(z)
    kl = jax.block_until_ready(kl)

    z_ref, kl_ref = reference_forward(x, params, noise)
    assert jnp.allclose(z, z_ref, atol=1e-4, rtol=1e-4), "z mismatch"
    assert jnp.allclose(kl, kl_ref, atol=1e-3, rtol=1e-4), "kl mismatch"

    print("KERNEL_OK")
</pallas_src>

<mosaic_0001>
module attributes {stable_mosaic.version = 11 : i64} {
  func.func @_vae_encoder_kernel(%arg0: i32, %arg1: memref<16x256xf32, #tpu.memory_space<vmem>>, %arg2: memref<256x128xf32, #tpu.memory_space<vmem>>, %arg3: memref<1x128xf32, #tpu.memory_space<vmem>>, %arg4: memref<128x64xf32, #tpu.memory_space<vmem>>, %arg5: memref<1x64xf32, #tpu.memory_space<vmem>>, %arg6: memref<64x16xf32, #tpu.memory_space<vmem>>, %arg7: memref<1x16xf32, #tpu.memory_space<vmem>>, %arg8: memref<16x8xf32, #tpu.memory_space<vmem>>, %arg9: memref<16x8xf32, #tpu.memory_space<vmem>>, %arg10: memref<16x1xf32, #tpu.memory_space<vmem>>) attributes {dimension_semantics = [#tpu.dimension_semantics<parallel>], iteration_bounds = array<i64: 4>, scalar_prefetch = 0 : i64, scratch_operands = 0 : i64, tpu.core_type = #tpu.core_type<tc>, window_params = [{transform_indices = @transform_0, window_bounds = array<i64: 16, 256>}, {pipeline_mode = #tpu.pipeline_mode<synchronous>, transform_indices = @transform_1, window_bounds = array<i64: 256, 128>}, {pipeline_mode = #tpu.pipeline_mode<synchronous>, transform_indices = @transform_2, window_bounds = array<i64: 1, 128>}, {pipeline_mode = #tpu.pipeline_mode<synchronous>, transform_indices = @transform_3, window_bounds = array<i64: 128, 64>}, {pipeline_mode = #tpu.pipeline_mode<synchronous>, transform_indices = @transform_4, window_bounds = array<i64: 1, 64>}, {pipeline_mode = #tpu.pipeline_mode<synchronous>, transform_indices = @transform_5, window_bounds = array<i64: 64, 16>}, {pipeline_mode = #tpu.pipeline_mode<synchronous>, transform_indices = @transform_6, window_bounds = array<i64: 1, 16>}, {transform_indices = @transform_7, window_bounds = array<i64: 16, 8>}, {transform_indices = @transform_8, window_bounds = array<i64: 16, 8>}, {transform_indices = @transform_9, window_bounds = array<i64: 16, 1>}]} {
    %c0 = arith.constant 0 : index
    %c0_0 = arith.constant 0 : index
    %0 = vector.load %arg1[%c0, %c0_0] : memref<16x256xf32, #tpu.memory_space<vmem>>, vector<16x256xf32>
    %c0_1 = arith.constant 0 : index
    %c0_2 = arith.constant 0 : index
    %1 = vector.load %arg2[%c0_1, %c0_2] : memref<256x128xf32, #tpu.memory_space<vmem>>, vector<256x128xf32>
    %cst = arith.constant dense<0.000000e+00> : vector<16x128xf32>
    %2 = tpu.matmul %0, %1, %cst {dimension_numbers = #tpu.dot_dimension_numbers<[1], [0], [0], [1], [0, 0, 1, 1], [], []>} : vector<16x256xf32>, vector<256x128xf32>, vector<16x128xf32> -> vector<16x128xf32>
    %c0_3 = arith.constant 0 : index
    %c0_4 = arith.constant 0 : index
    %3 = vector.load %arg3[%c0_3, %c0_4] : memref<1x128xf32, #tpu.memory_space<vmem>>, vector<1x128xf32>
    %4 = vector.broadcast %3 : vector<1x128xf32> to vector<16x128xf32>
    %5 = arith.addf %2, %4 : vector<16x128xf32>
    %cst_5 = arith.constant 0.000000e+00 : f32
    %6 = vector.broadcast %cst_5 : f32 to vector<16x128xf32>
    %7 = arith.maximumf %5, %6 : vector<16x128xf32>
    %c0_6 = arith.constant 0 : index
    %c0_7 = arith.constant 0 : index
    %8 = vector.load %arg4[%c0_6, %c0_7] : memref<128x64xf32, #tpu.memory_space<vmem>>, vector<128x64xf32>
    %cst_8 = arith.constant dense<0.000000e+00> : vector<16x64xf32>
    %9 = tpu.matmul %7, %8, %cst_8 {dimension_numbers = #tpu.dot_dimension_numbers<[1], [0], [0], [1], [0, 0, 1, 1], [], []>} : vector<16x128xf32>, vector<128x64xf32>, vector<16x64xf32> -> vector<16x64xf32>
    %c0_9 = arith.constant 0 : index
    %c0_10 = arith.constant 0 : index
    %10 = vector.load %arg5[%c0_9, %c0_10] : memref<1x64xf32, #tpu.memory_space<vmem>>, vector<1x64xf32>
    %11 = vector.broadcast %10 : vector<1x64xf32> to vector<16x64xf32>
    %12 = arith.addf %9, %11 : vector<16x64xf32>
    %cst_11 = arith.constant 0.000000e+00 : f32
    %13 = vector.broadcast %cst_11 : f32 to vector<16x64xf32>
    %14 = arith.maximumf %12, %13 : vector<16x64xf32>
    %c0_12 = arith.constant 0 : index
    %c0_13 = arith.constant 0 : index
    %15 = vector.load %arg6[%c0_12, %c0_13] : memref<64x16xf32, #tpu.memory_space<vmem>>, vector<64x16xf32>
    %cst_14 = arith.constant dense<0.000000e+00> : vector<16x16xf32>
    %16 = tpu.matmul %14, %15, %cst_14 {dimension_numbers = #tpu.dot_dimension_numbers<[1], [0], [0], [1], [0, 0, 1, 1], [], []>} : vector<16x64xf32>, vector<64x16xf32>, vector<16x16xf32> -> vector<16x16xf32>
    %c0_15 = arith.constant 0 : index
    %c0_16 = arith.constant 0 : index
    %17 = vector.load %arg7[%c0_15, %c0_16] : memref<1x16xf32, #tpu.memory_space<vmem>>, vector<1x16xf32>
    %18 = vector.broadcast %17 : vector<1x16xf32> to vector<16x16xf32>
    %19 = arith.addf %16, %18 : vector<16x16xf32>
    %20 = vector.extract_strided_slice %19 {offsets = [0, 0], sizes = [16, 8], strides = [1, 1]} : vector<16x16xf32> to vector<16x8xf32>
    %21 = vector.extract_strided_slice %19 {offsets = [0, 8], sizes = [16, 8], strides = [1, 1]} : vector<16x16xf32> to vector<16x8xf32>
    %22 = math.exp %21 : vector<16x8xf32>
    %c0_17 = arith.constant 0 : index
    %c0_18 = arith.constant 0 : index
    %23 = vector.load %arg8[%c0_17, %c0_18] : memref<16x8xf32, #tpu.memory_space<vmem>>, vector<16x8xf32>
    %24 = arith.mulf %22, %23 : vector<16x8xf32>
    %25 = arith.addf %20, %24 : vector<16x8xf32>
    %c0_19 = arith.constant 0 : index
    %c0_20 = arith.constant 0 : index
    %26 = vector.load %arg9[%c0_19, %c0_20] : memref<16x8xf32, #tpu.memory_space<vmem>>, vector<16x8xf32>
    tpu.vector_store %arg9[%c0_19, %c0_20], %25 {strides = array<i32>} : memref<16x8xf32, #tpu.memory_space<vmem>>, vector<16x8xf32>,
    %27 = arith.mulf %22, %22 : vector<16x8xf32>
    %28 = arith.mulf %20, %20 : vector<16x8xf32>
    %29 = arith.addf %27, %28 : vector<16x8xf32>
    %30 = arith.subf %29, %21 : vector<16x8xf32>
    %cst_21 = arith.constant 5.000000e-01 : f32
    %31 = vector.broadcast %cst_21 : f32 to vector<16x8xf32>
    %32 = arith.subf %30, %31 : vector<16x8xf32>
    %cst_22 = arith.constant dense<0.000000e+00> : vector<16xf32>
    %33 = vector.multi_reduction <add>, %32, %cst_22 [1] : vector<16x8xf32> to vector<16xf32>
    %34 = vector.shape_cast %33 : vector<16xf32> to vector<16x1xf32>
    %c0_23 = arith.constant 0 : index
    %c0_24 = arith.constant 0 : index
    %35 = vector.load %arg10[%c0_23, %c0_24] : memref<16x1xf32, #tpu.memory_space<vmem>>, vector<16x1xf32>
    tpu.vector_store %arg10[%c0_23, %c0_24], %34 {strides = array<i32>} : memref<16x1xf32, #tpu.memory_space<vmem>>, vector<16x1xf32>,
    return
  }
  func.func @transform_0(%arg0: i32) -> (i32, i32) {
    %c0_i32 = arith.constant 0 : i32
    %c0_i32_0 = arith.constant 0 : i32
    return %arg0, %c0_i32 : i32, i32
  }
  func.func @transform_1(%arg0: i32) -> (i32, i32) {
    %c0_i32 = arith.constant 0 : i32
    %c0_i32_0 = arith.constant 0 : i32
    %c0_i32_1 = arith.constant 0 : i32
    return %c0_i32, %c0_i32_0 : i32, i32
  }
  func.func @transform_2(%arg0: i32) -> (i32, i32) {
    %c0_i32 = arith.constant 0 : i32
    %c0_i32_0 = arith.constant 0 : i32
    %c0_i32_1 = arith.constant 0 : i32
    return %c0_i32, %c0_i32_0 : i32, i32
  }
  func.func @transform_3(%arg0: i32) -> (i32, i32) {
    %c0_i32 = arith.constant 0 : i32
    %c0_i32_0 = arith.constant 0 : i32
    %c0_i32_1 = arith.constant 0 : i32
    return %c0_i32, %c0_i32_0 : i32, i32
  }
  func.func @transform_4(%arg0: i32) -> (i32, i32) {
    %c0_i32 = arith.constant 0 : i32
    %c0_i32_0 = arith.constant 0 : i32
    %c0_i32_1 = arith.constant 0 : i32
    return %c0_i32, %c0_i32_0 : i32, i32
  }
  func.func @transform_5(%arg0: i32) -> (i32, i32) {
    %c0_i32 = arith.constant 0 : i32
    %c0_i32_0 = arith.constant 0 : i32
    %c0_i32_1 = arith.constant 0 : i32
    return %c0_i32, %c0_i32_0 : i32, i32
  }
  func.func @transform_6(%arg0: i32) -> (i32, i32) {
    %c0_i32 = arith.constant 0 : i32
    %c0_i32_0 = arith.constant 0 : i32
    %c0_i32_1 = arith.constant 0 : i32
    return %c0_i32, %c0_i32_0 : i32, i32
  }
  func.func @transform_7(%arg0: i32) -> (i32, i32) {
    %c0_i32 = arith.constant 0 : i32
    %c0_i32_0 = arith.constant 0 : i32
    return %arg0, %c0_i32 : i32, i32
  }
  func.func @transform_8(%arg0: i32) -> (i32, i32) {
    %c0_i32 = arith.constant 0 : i32
    %c0_i32_0 = arith.constant 0 : i32
    return %arg0, %c0_i32 : i32, i32
  }
  func.func @transform_9(%arg0: i32) -> (i32, i32) {
    %c0_i32 = arith.constant 0 : i32
    %c0_i32_0 = arith.constant 0 : i32
    return %arg0, %c0_i32 : i32, i32
  }
}

</mosaic_0001>

<llo_original>
// kernel: tpu_custom_call.1
$region0: #{tpu_custom_call.1}
  #allocation0 [shape = 'u32[]', space=smem, size = 0x4, offset = 0x4, fixed_abs, tag = 'smem constant byte address 0x4 - core index']
  #allocation1 [shape = 'u32[72,128]{1,0:T(1,128)}', space=vmem, size = 0x9000, scoped, tag = 'internal scratch']
  %s0 = inlined_call_operand.hbm [shape: f32[64,256], index: 0, kind: input, shape index: {}]
  %s1 = inlined_call_operand.vmem [shape: f32[256,128], index: 1, kind: input, shape index: {}]
  %s2 = inlined_call_operand.vmem [shape: f32[1,128], index: 2, kind: input, shape index: {}]
  %s3 = inlined_call_operand.vmem [shape: f32[128,64], index: 3, kind: input, shape index: {}]
  %s4 = inlined_call_operand.vmem [shape: f32[1,64], index: 4, kind: input, shape index: {}]
  %s5 = inlined_call_operand.vmem [shape: f32[64,16], index: 5, kind: input, shape index: {}]
  %s6 = inlined_call_operand.vmem [shape: f32[1,16], index: 6, kind: input, shape index: {}]
  %s7 = inlined_call_operand.vmem [shape: f32[64,8], index: 7, kind: input, shape index: {}]
  %s8 = inlined_call_operand.vmem [shape: f32[64,8], index: 8, kind: output, shape index: {0}]
  %s9 = inlined_call_operand.vmem [shape: f32[64,1], index: 9, kind: output, shape index: {1}]
  %10 = xla_tuple %s8, %s9
  %s11 = sld [smem:[#allocation0]]
  $region77: #{tpu_custom_call.1} parent=0
    _
  %s13 = ssub.s32 1, %s11
  %s14 = scalar_select 0, %s13, %s11
  $region1: #{tpu_custom_call.1} parent=0
    #allocation2 [shape = 'u8[32768]{0}', space=vmem, size = 0x8000, scoped, tag = 'input window, operand 0']
    #allocation3 [shape = 's32[2]{0}', space=sflag, size = 0x8, scoped, tag = 'scoped memory for tpu_custom_call.1']
    %15 = vsyncpa [#allocation3], 0
    %s16 = scalar_lea.sflag [#allocation3], 1
    %17 = vsyncpa %s16, 0
    loop: start=0, step=1, limit=6
    $region2: #{tpu_custom_call.1} parent=1 // loop_pre_header
      _
    $region3: #{tpu_custom_call.1} parent=1 // loop_header
      %s19 = sphi 0, %s23
      %p20 = scmp.ge.s32.totalorder %s19, 6
      %s29 = sphi 0, %s31
      %s32 = sphi 0, %s29
      %s33 = sphi 0, %s32
      %s49 = sphi 0, %s33
      %s53 = sphi 0, %s53
      %s55 = sphi 0, %s53
      %s56 = sphi 0, %s55
      %s70 = sphi 0, %s56
      %s74 = sphi 0, %s74
      %s76 = sphi 0, %s74
      %s77 = sphi 0, %s76
      %s91 = sphi 0, %s77
      %s95 = sphi 0, %s95
      %s97 = sphi 0, %s95
      %s98 = sphi 0, %s97
      %s112 = sphi 0, %s98
      %s116 = sphi 0, %s116
      %s118 = sphi 0, %s116
      %s119 = sphi 0, %s118
      %s133 = sphi 0, %s119
      %s137 = sphi 0, %s137
      %s139 = sphi 0, %s137
      %s140 = sphi 0, %s139
      %s154 = sphi 0, %s140
      %s158 = sphi 0, %s158
      %s160 = sphi 0, %s158
      %s161 = sphi 0, %s160
      %s175 = sphi 0, %s161
      %s181 = sphi 0, %s183
      %s184 = sphi 0, %s181
      %s185 = sphi 0, %s184
      %s201 = sphi 0, %s185
      %s207 = sphi 0, %s209
      %s210 = sphi 0, %s207
      %s211 = sphi 0, %s210
      %s227 = sphi 0, %s211
      %s233 = sphi 0, %s235
      %s236 = sphi 0, %s233
      %s237 = sphi 0, %s236
      %s253 = sphi 0, %s237
    $region4: #{tpu_custom_call.1} parent=1 // loop_header_branch
      %22 = sbr.rel (%p20) target = $region8
    $region5: #{tpu_custom_call.1} parent=1 // loop_body
      %s24 = ssub.s32 %s19, 1
      %s25 = ssub.s32 %s19, 2
      %s26 = sadd.s32 %s19, 1
      %s27 = ssub.s32 %s19, %s26
      %p28 = scmp.eq.s32.totalorder %s27, 0
      %s30 = sadd.s32 %s29, 1
      %s31 = scalar_select %p28, %s29, %s30
      %p34 = pneg %p28
      %p35 = scmp.eq.s32.totalorder %s19, 3
      %p36 = por %p34, %p35
      %p37 = scmp.ne.s32.totalorder %s29, %s32
      %p38 = scmp.eq.s32.totalorder %s19, 0
      %p39 = por %p37, %p38
      %p40 = scmp.ne.s32.totalorder %s29, %s32
      %p41 = scmp.eq.s32.totalorder %s24, 3
      %p42 = por %p40, %p41
      %p43 = scmp.ne.s32.totalorder %s32, %s33
      %p44 = scmp.eq.s32.totalorder %s24, 0
      %p45 = por %p43, %p44
      %p46 = scmp.ne.s32.totalorder %s32, %s33
      %p47 = scmp.eq.s32.totalorder %s25, 3
      %p48 = por %p46, %p47
      %p50 = scmp.ne.s32.totalorder %s33, %s49
      %p51 = scmp.eq.s32.totalorder %s25, 0
      %p52 = por %p50, %p51
      %s54 = sadd.s32 %s53, 1
      %p57 = scmp.eq.s32.totalorder %s19, 3
      %p58 = scmp.ne.s32.totalorder %s53, %s55
      %p59 = scmp.eq.s32.totalorder %s19, 0
      %p60 = por %p58, %p59
      %p61 = scmp.ne.s32.totalorder %s53, %s55
      %p62 = scmp.eq.s32.totalorder %s24, 3
      %p63 = por %p61, %p62
      %p64 = scmp.ne.s32.totalorder %s55, %s56
      %p65 = scmp.eq.s32.totalorder %s24, 0
      %p66 = por %p64, %p65
      %p67 = scmp.ne.s32.totalorder %s55, %s56
      %p68 = scmp.eq.s32.totalorder %s25, 3
      %p69 = por %p67, %p68
      %p71 = scmp.ne.s32.totalorder %s56, %s70
      %p72 = scmp.eq.s32.totalorder %s25, 0
      %p73 = por %p71, %p72
      %s75 = sadd.s32 %s74, 1
      %p78 = scmp.eq.s32.totalorder %s19, 3
      %p79 = scmp.ne.s32.totalorder %s74, %s76
      %p80 = scmp.eq.s32.totalorder %s19, 0
      %p81 = por %p79, %p80
      %p82 = scmp.ne.s32.totalorder %s74, %s76
      %p83 = scmp.eq.s32.totalorder %s24, 3
      %p84 = por %p82, %p83
      %p85 = scmp.ne.s32.totalorder %s76, %s77
      %p86 = scmp.eq.s32.totalorder %s24, 0
      %p87 = por %p85, %p86
      %p88 = scmp.ne.s32.totalorder %s76, %s77
      %p89 = scmp.eq.s32.totalorder %s25, 3
      %p90 = por %p88, %p89
      %p92 = scmp.ne.s32.totalorder %s77, %s91
      %p93 = scmp.eq.s32.totalorder %s25, 0
      %p94 = por %p92, %p93
      %s96 = sadd.s32 %s95, 1
      %p99 = scmp.eq.s32.totalorder %s19, 3
      %p100 = scmp.ne.s32.totalorder %s95, %s97
      %p101 = scmp.eq.s32.totalorder %s19, 0
      %p102 = por %p100, %p101
      %p103 = scmp.ne.s32.totalorder %s95, %s97
      %p104 = scmp.eq.s32.totalorder %s24, 3
      %p105 = por %p103, %p104
      %p106 = scmp.ne.s32.totalorder %s97, %s98
      %p107 = scmp.eq.s32.totalorder %s24, 0
      %p108 = por %p106, %p107
      %p109 = scmp.ne.s32.totalorder %s97, %s98
      %p110 = scmp.eq.s32.totalorder %s25, 3
      %p111 = por %p109, %p110
      %p113 = scmp.ne.s32.totalorder %s98, %s112
      %p114 = scmp.eq.s32.totalorder %s25, 0
      %p115 = por %p113, %p114
      %s117 = sadd.s32 %s116, 1
      %p120 = scmp.eq.s32.totalorder %s19, 3
      %p121 = scmp.ne.s32.totalorder %s116, %s118
      %p122 = scmp.eq.s32.totalorder %s19, 0
      %p123 = por %p121, %p122
      %p124 = scmp.ne.s32.totalorder %s116, %s118
      %p125 = scmp.eq.s32.totalorder %s24, 3
      %p126 = por %p124, %p125
      %p127 = scmp.ne.s32.totalorder %s118, %s119
      %p128 = scmp.eq.s32.totalorder %s24, 0
      %p129 = por %p127, %p128
      %p130 = scmp.ne.s32.totalorder %s118, %s119
      %p131 = scmp.eq.s32.totalorder %s25, 3
      %p132 = por %p130, %p131
      %p134 = scmp.ne.s32.totalorder %s119, %s133
      %p135 = scmp.eq.s32.totalorder %s25, 0
      %p136 = por %p134, %p135
      %s138 = sadd.s32 %s137, 1
      %p141 = scmp.eq.s32.totalorder %s19, 3
      %p142 = scmp.ne.s32.totalorder %s137, %s139
      %p143 = scmp.eq.s32.totalorder %s19, 0
      %p144 = por %p142, %p143
      %p145 = scmp.ne.s32.totalorder %s137, %s139
      %p146 = scmp.eq.s32.totalorder %s24, 3
      %p147 = por %p145, %p146
      %p148 = scmp.ne.s32.totalorder %s139, %s140
      %p149 = scmp.eq.s32.totalorder %s24, 0
      %p150 = por %p148, %p149
      %p151 = scmp.ne.s32.totalorder %s139, %s140
      %p152 = scmp.eq.s32.totalorder %s25, 3
      %p153 = por %p151, %p152
      %p155 = scmp.ne.s32.totalorder %s140, %s154
      %p156 = scmp.eq.s32.totalorder %s25, 0
      %p157 = por %p155, %p156
      %s159 = sadd.s32 %s158, 1
      %p162 = scmp.eq.s32.totalorder %s19, 3
      %p163 = scmp.ne.s32.totalorder %s158, %s160
      %p164 = scmp.eq.s32.totalorder %s19, 0
      %p165 = por %p163, %p164
      %p166 = scmp.ne.s32.totalorder %s158, %s160
      %p167 = scmp.eq.s32.totalorder %s24, 3
      %p168 = por %p166, %p167
      %p169 = scmp.ne.s32.totalorder %s160, %s161
      %p170 = scmp.eq.s32.totalorder %s24, 0
      %p171 = por %p169, %p170
      %p172 = scmp.ne.s32.totalorder %s160, %s161
      %p173 = scmp.eq.s32.totalorder %s25, 3
      %p174 = por %p172, %p173
      %p176 = scmp.ne.s32.totalorder %s161, %s175
      %p177 = scmp.eq.s32.totalorder %s25, 0
      %p178 = por %p176, %p177
      %s179 = ssub.s32 %s19, %s26
      %p180 = scmp.eq.s32.totalorder %s179, 0
      %s182 = sadd.s32 %s181, 1
      %s183 = scalar_select %p180, %s181, %s182
      %p186 = pneg %p180
      %p187 = scmp.eq.s32.totalorder %s19, 3
      %p188 = por %p186, %p187
      %p189 = scmp.ne.s32.totalorder %s181, %s184
      %p190 = scmp.eq.s32.totalorder %s19, 0
      %p191 = por %p189, %p190
      %p192 = scmp.ne.s32.totalorder %s181, %s184
      %p193 = scmp.eq.s32.totalorder %s24, 3
      %p194 = por %p192, %p193
      %p195 = scmp.ne.s32.totalorder %s184, %s185
      %p196 = scmp.eq.s32.totalorder %s24, 0
      %p197 = por %p195, %p196
      %p198 = scmp.ne.s32.totalorder %s184, %s185
      %p199 = scmp.eq.s32.totalorder %s25, 3
      %p200 = por %p198, %p199
      %p202 = scmp.ne.s32.totalorder %s185, %s201
      %p203 = scmp.eq.s32.totalorder %s25, 0
      %p204 = por %p202, %p203
      %s205 = ssub.s32 %s19, %s26
      %p206 = scmp.eq.s32.totalorder %s205, 0
      %s208 = sadd.s32 %s207, 1
      %s209 = scalar_select %p206, %s207, %s208
      %p212 = pneg %p206
      %p213 = scmp.eq.s32.totalorder %s19, 3
      %p214 = por %p212, %p213
      %p215 = scmp.ne.s32.totalorder %s207, %s210
      %p216 = scmp.eq.s32.totalorder %s19, 0
      %p217 = por %p215, %p216
      %p218 = scmp.ne.s32.totalorder %s207, %s210
      %p219 = scmp.eq.s32.totalorder %s24, 3
      %p220 = por %p218, %p219
      %p221 = scmp.ne.s32.totalorder %s210, %s211
      %p222 = scmp.eq.s32.totalorder %s24, 0
      %p223 = por %p221, %p222
      %p224 = scmp.ne.s32.totalorder %s210, %s211
      %p225 = scmp.eq.s32.totalorder %s25, 3
      %p226 = por %p224, %p225
      %p228 = scmp.ne.s32.totalorder %s211, %s227
      %p229 = scmp.eq.s32.totalorder %s25, 0
      %p230 = por %p228, %p229
      %s231 = ssub.s32 %s19, %s26
      %p232 = scmp.eq.s32.totalorder %s231, 0
      %s234 = sadd.s32 %s233, 1
      %s235 = scalar_select %p232, %s233, %s234
      %p238 = pneg %p232
      %p239 = scmp.eq.s32.totalorder %s19, 3
      %p240 = por %p238, %p239
      %p241 = scmp.ne.s32.totalorder %s233, %s236
      %p242 = scmp.eq.s32.totalorder %s19, 0
      %p243 = por %p241, %p242
      %p244 = scmp.ne.s32.totalorder %s233, %s236
      %p245 = scmp.eq.s32.totalorder %s24, 3
      %p246 = por %p244, %p245
      %p247 = scmp.ne.s32.totalorder %s236, %s237
      %p248 = scmp.eq.s32.totalorder %s24, 0
      %p249 = por %p247, %p248
      %p250 = scmp.ne.s32.totalorder %s236, %s237
      %p251 = scmp.eq.s32.totalorder %s25, 3
      %p252 = por %p250, %p251
      %p254 = scmp.ne.s32.totalorder %s237, %s253
      %p255 = scmp.eq.s32.totalorder %s25, 0
      %p256 = por %p254, %p255
      %p257 = scmp.le.s32.totalorder 1, %s19
      %p258 = scmp.lt.s32.totalorder %s19, 5
      %p259 = pnand %p257, %p258
      %p260 = pneg %p259
      // Predicated region
      $region9: #{tpu_custom_call.1} parent=5 // pred_check
        _
      $region10: #{tpu_custom_call.1} parent=5 // pred_check_branch
        %262 = sbr.rel (%p259) target = $region12
      $region11: #{tpu_custom_call.1} parent=5 // pred_region
        %s263 = ssub.s32 %s19, 1
        // Predicated region
        $region13: #{tpu_custom_call.1} parent=11 // pred_check
          %p264 = pneg %p66
        $region14: #{tpu_custom_call.1} parent=11 // pred_check_branch
          %266 = sbr.rel (%p264) target = $region16
        $region15: #{tpu_custom_call.1} parent=11 // pred_region
          _
        $region16: #{tpu_custom_call.1} parent=11 // pred_fallthru
          _
        // Predicated region
        $region17: #{tpu_custom_call.1} parent=11 // pred_check
          %p267 = pneg %p87
        $region18: #{tpu_custom_call.1} parent=11 // pred_check_branch
          %269 = sbr.rel (%p267) target = $region20
        $region19: #{tpu_custom_call.1} parent=11 // pred_region
          _
        $region20: #{tpu_custom_call.1} parent=11 // pred_fallthru
          _
        // Predicated region
        $region21: #{tpu_custom_call.1} parent=11 // pred_check
          %p270 = pneg %p108
        $region22: #{tpu_custom_call.1} parent=11 // pred_check_branch
          %272 = sbr.rel (%p270) target = $region24
        $region23: #{tpu_custom_call.1} parent=11 // pred_region
          _
        $region24: #{tpu_custom_call.1} parent=11 // pred_fallthru
          _
        // Predicated region
        $region25: #{tpu_custom_call.1} parent=11 // pred_check
          %p273 = pneg %p129
        $region26: #{tpu_custom_call.1} parent=11 // pred_check_branch
          %275 = sbr.rel (%p273) target = $region28
        $region27: #{tpu_custom_call.1} parent=11 // pred_region
          _
        $region28: #{tpu_custom_call.1} parent=11 // pred_fallthru
          _
        // Predicated region
        $region29: #{tpu_custom_call.1} parent=11 // pred_check
          %p276 = pneg %p150
        $region30: #{tpu_custom_call.1} parent=11 // pred_check_branch
          %278 = sbr.rel (%p276) target = $region32
        $region31: #{tpu_custom_call.1} parent=11 // pred_region
          _
        $region32: #{tpu_custom_call.1} parent=11 // pred_fallthru
          _
        // Predicated region
        $region33: #{tpu_custom_call.1} parent=11 // pred_check
          %p279 = pneg %p171
        $region34: #{tpu_custom_call.1} parent=11 // pred_check_branch
          %281 = sbr.rel (%p279) target = $region36
        $region35: #{tpu_custom_call.1} parent=11 // pred_region
          _
        $region36: #{tpu_custom_call.1} parent=11 // pred_fallthru
          _
      $region12: #{tpu_custom_call.1} parent=5 // pred_fallthru
        _
      %p282 = scmp.lt.s32.totalorder %s19, 4
      // Predicated region
      $region37: #{tpu_custom_call.1} parent=5 // pred_check
        %p283 = pneg %p282
      $region38: #{tpu_custom_call.1} parent=5 // pred_check_branch
        %285 = sbr.rel (%p283) target = $region40
      $region39: #{tpu_custom_call.1} parent=5 // pred_region
        // Predicated region
        $region41: #{tpu_custom_call.1} parent=39 // pred_check
          %p286 = pneg %p39
        $region42: #{tpu_custom_call.1} parent=39 // pred_check_branch
          %288 = sbr.rel (%p286) target = $region44
        $region43: #{tpu_custom_call.1} parent=39 // pred_region
          %s289 = sand.u32 %s29, 1
          %s290 = scalar_lea.sflag [#allocation3], %s289
          %s291 = sand.u32 %s29, 1
          %s292 = smul.addr %s291, 32
          %s293 = scalar_lea.vmem [#allocation2], %s292
          %s294 = smul.u32 2, %s19
          %296 = vsyncadd %s290, 0
          %s297 = smul.addr %s294, 2
          %s298 = smul.addr %s297, 8
          %s299 = scalar_lea.hbm %s0, %s298
          %s300 = sshll.u32 %s299, 4
          %s301 = int_to_ptr.hbm [resolvable:$true] %s300
          %s302 = sshll.u32 %s293, 4
          %s303 = int_to_ptr.vmem [resolvable:$true] %s302
          %308 = dma.hbm_to_vmem [thread:$0]  %s301, 512, %s303, %s290, 256, 256, 16
        $region44: #{tpu_custom_call.1} parent=39 // pred_fallthru
          _
        // Predicated region
        $region45: #{tpu_custom_call.1} parent=39 // pred_check
          %p309 = pneg %p191
        $region46: #{tpu_custom_call.1} parent=39 // pred_check_branch
          %311 = sbr.rel (%p309) target = $region48
        $region47: #{tpu_custom_call.1} parent=39 // pred_region
          %s312 = smul.u32 2, %s19
          %p313 = scmp.lt.s32.totalorder %s312, 7
          %s314 = scalar_select %p313, %s312, 7
          %s315 = smul.addr %s314, 8
          %s316 = scalar_lea.vmem %s7, %s315
          %s317 = smul.u32 2, %s19
        $region48: #{tpu_custom_call.1} parent=39 // pred_fallthru
          _
      $region40: #{tpu_custom_call.1} parent=5 // pred_fallthru
        _
      %p318 = scmp.le.s32.totalorder 1, %s19
      %p319 = scmp.lt.s32.totalorder %s19, 5
      %p320 = pnand %p318, %p319
      %p321 = pneg %p320
      // Predicated region
      $region49: #{tpu_custom_call.1} parent=5 // pred_check
        _
      $region50: #{tpu_custom_call.1} parent=5 // pred_check_branch
        %323 = sbr.rel (%p320) target = $region52
      $region51: #{tpu_custom_call.1} parent=5 // pred_region
        %s324 = ssub.s32 %s19, 1
        %s325 = sand.u32 %s32, 1
        %s326 = scalar_lea.sflag [#allocation3], %s325
        %s327 = sand.u32 %s32, 1
        %s328 = smul.addr %s327, 32
        %s329 = scalar_lea.vmem [#allocation2], %s328
        // Predicated region
        $region53: #{tpu_custom_call.1} parent=51 // pred_check
          %p330 = pneg %p45
        $region54: #{tpu_custom_call.1} parent=51 // pred_check_branch
          %332 = sbr.rel (%p330) target = $region56
        $region55: #{tpu_custom_call.1} parent=51 // pred_region
          %334 = dma.done %s326, 512
        $region56: #{tpu_custom_call.1} parent=51 // pred_fallthru
          _
        %s335 = sand.u32 %s32, 1
        %s336 = scalar_lea.sflag [#allocation3], %s335
        %s337 = sand.u32 %s32, 1
        %s338 = smul.addr %s337, 32
        %s339 = scalar_lea.vmem [#allocation2], %s338
        %p340 = pneg %p45
        %p341 = pneg %p42
        %p342 = pneg %p66
        %p343 = pneg %p63
        %p344 = pneg %p87
        %p345 = pneg %p84
        %p346 = pneg %p108
        %p347 = pneg %p105
        %p348 = pneg %p129
        %p349 = pneg %p126
        %p350 = pneg %p150
        %p351 = pneg %p147
        %p352 = pneg %p171
        %p353 = pneg %p168
        %s354 = smul.u32 2, %s24
        %p355 = scmp.lt.s32.totalorder %s354, 7
        %s356 = scalar_select %p355, %s354, 7
        %s357 = smul.addr %s356, 8
        %s358 = scalar_lea.vmem %s7, %s357
        %p359 = pneg %p197
        %p360 = pneg %p194
        %p361 = pneg %p223
        %p362 = pneg %p220
        %s363 = smul.u32 2, %s24
        %p364 = scmp.lt.s32.totalorder %s363, 7
        %s365 = scalar_select %p364, %s363, 7
        %s366 = smul.addr %s365, 8
        %s367 = scalar_lea.vmem %s8, %s366
        %p368 = pneg %p249
        %p369 = pneg %p246
        %s370 = smul.u32 2, %s24
        %p371 = scmp.lt.s32.totalorder %s370, 7
        %s372 = scalar_select %p371, %s370, 7
        %s373 = smul.addr %s372, 8
        %s374 = scalar_lea.vmem %s9, %s373
        %s375 = smul.u32 2, %s24
        %s376 = smul.u32 2, %s24
        %p377 = scmp.lt.s32.totalorder %s376, 7
        %s378 = scalar_select %p377, %s376, 7
        %s379 = smul.addr %s378, 8
        %s380 = scalar_lea.vmem %s7, %s379
        %s381 = smul.u32 2, %s24
        %s382 = smul.u32 2, %s24
        %p383 = scmp.lt.s32.totalorder %s382, 7
        %s384 = scalar_select %p383, %s382, 7
        %s385 = smul.addr %s384, 8
        %s386 = scalar_lea.vmem %s8, %s385
        %s387 = smul.u32 2, %s24
        %s388 = smul.u32 2, %s24
        %p389 = scmp.lt.s32.totalorder %s388, 7
        %s390 = scalar_select %p389, %s388, 7
        %s391 = smul.addr %s390, 8
        %s392 = scalar_lea.vmem %s9, %s391
        %s393 = smul.u32 2, %s24
        %v394 = vld [vmem:[%s329] sm:$0xff]
        %v395 = vld [vmem:[%s329 + $0x8] sm:$0xff]
        %v396 = vld [vmem:[%s329 + $0x10] sm:$0xff]
        %v397 = vld [vmem:[%s329 + $0x18] sm:$0xff]
        %v398 = vld [vmem:[%s1] sm:$0xff]
        %v399 = vld [vmem:[%s1 + $0x8] sm:$0xff]
        %v400 = vld [vmem:[%s1 + $0x10] sm:$0xff]
        %v401 = vld [vmem:[%s1 + $0x18] sm:$0xff]
        %v402 = vld [vmem:[%s1 + $0x20] sm:$0xff]
        %v403 = vld [vmem:[%s1 + $0x28] sm:$0xff]
        %v404 = vld [vmem:[%s1 + $0x30] sm:$0xff]
        %v405 = vld [vmem:[%s1 + $0x38] sm:$0xff]
        %v406 = vld [vmem:[%s1 + $0x40] sm:$0xff]
        %v407 = vld [vmem:[%s1 + $0x48] sm:$0xff]
        %v408 = vld [vmem:[%s1 + $0x50] sm:$0xff]
        %v409 = vld [vmem:[%s1 + $0x58] sm:$0xff]
        %v410 = vld [vmem:[%s1 + $0x60] sm:$0xff]
        %v411 = vld [vmem:[%s1 + $0x68] sm:$0xff]
        %v412 = vld [vmem:[%s1 + $0x70] sm:$0xff]
        %v413 = vld [vmem:[%s1 + $0x78] sm:$0xff]
        %v414 = vld [vmem:[%s1 + $0x80] sm:$0xff]
        %v415 = vld [vmem:[%s1 + $0x88] sm:$0xff]
        %v416 = vld [vmem:[%s1 + $0x90] sm:$0xff]
        %v417 = vld [vmem:[%s1 + $0x98] sm:$0xff]
        %v418 = vld [vmem:[%s1 + $0xa0] sm:$0xff]
        %v419 = vld [vmem:[%s1 + $0xa8] sm:$0xff]
        %v420 = vld [vmem:[%s1 + $0xb0] sm:$0xff]
        %v421 = vld [vmem:[%s1 + $0xb8] sm:$0xff]
        %v422 = vld [vmem:[%s1 + $0xc0] sm:$0xff]
        %v423 = vld [vmem:[%s1 + $0xc8] sm:$0xff]
        %v424 = vld [vmem:[%s1 + $0xd0] sm:$0xff]
        %v425 = vld [vmem:[%s1 + $0xd8] sm:$0xff]
        %v426 = vld [vmem:[%s1 + $0xe0] sm:$0xff]
        %v427 = vld [vmem:[%s1 + $0xe8] sm:$0xff]
        %v428 = vld [vmem:[%s1 + $0xf0] sm:$0xff]
        %v429 = vld [vmem:[%s1 + $0xf8] sm:$0xff]
        %v430 = vld [vmem:[%s2] sm:$0x1]
        %v432 = vperm.slane %v430, 0
        %434 = vmatpush.msra.mxu0 %v413
        %435 = vmatpush.msra.mxu0 %v412
        %436 = vmatpush.msra.mxu0 %v411
        %437 = vmatpush.msra.mxu0 %v410
        %438 = vmatpush.msra.mxu0 %v409
        %439 = vmatpush.msra.mxu0 %v408
        %440 = vmatpush.msra.mxu0 %v407
        %441 = vmatpush.msra.mxu0 %v406
        %442 = vmatpush.msra.mxu0 %v405
        %443 = vmatpush.msra.mxu0 %v404
        %444 = vmatpush.msra.mxu0 %v403
        %445 = vmatpush.msra.mxu0 %v402
        %446 = vmatpush.msra.mxu0 %v401
        %447 = vmatpush.msra.mxu0 %v400
        %448 = vmatpush.msra.mxu0 %v399
        %449 = vmatpush.msra.mxu0 %v398
        %450 = vmatmul.f32.gmra.mxu0 %v394
        %v451 = vpop.f32.mrf.mxu0
        %v452 = vadd.f32 %v432, %v451
        %453 = vmatmul.f32.gmra.mxu0 %v396
        %v454 = vpop.f32.mrf.mxu0
        %v455 = vadd.f32 %v432, %v454
        %456 = vdwg.mxu0
        %457 = vmatpush.msra.mxu0 %v429
        %458 = vmatpush.msra.mxu0 %v428
        %459 = vmatpush.msra.mxu0 %v427
        %460 = vmatpush.msra.mxu0 %v426
        %461 = vmatpush.msra.mxu0 %v425
        %462 = vmatpush.msra.mxu0 %v424
        %463 = vmatpush.msra.mxu0 %v423
        %464 = vmatpush.msra.mxu0 %v422
        %465 = vmatpush.msra.mxu0 %v421
        %466 = vmatpush.msra.mxu0 %v420
        %467 = vmatpush.msra.mxu0 %v419
        %468 = vmatpush.msra.mxu0 %v418
        %469 = vmatpush.msra.mxu0 %v417
        %470 = vmatpush.msra.mxu0 %v416
        %471 = vmatpush.msra.mxu0 %v415
        %472 = vmatpush.msra.mxu0 %v414
        %473 = vmatmul.f32.gmra.mxu0 %v395
        %v474 = vpop.f32.mrf.mxu0
        %v475 = vadd.f32 %v452, %v474
        %476 = vmatmul.f32.gmra.mxu0 %v397
        %v477 = vpop.f32.mrf.mxu0
        %v478 = vadd.f32 %v455, %v477
        %479 = vdwg.mxu0
        %v480 = vmax.f32 %v475, 0.0
        %v481 = vmax.f32 %v478, 0.0
        %v482 = vld [vmem:[%s3] sm:$0xff]
        %v483 = vld [vmem:[%s3 + $0x8] sm:$0xff]
        %v484 = vld [vmem:[%s3 + $0x10] sm:$0xff]
        %v485 = vld [vmem:[%s3 + $0x18] sm:$0xff]
        %v486 = vld [vmem:[%s3 + $0x20] sm:$0xff]
        %v487 = vld [vmem:[%s3 + $0x28] sm:$0xff]
        %v488 = vld [vmem:[%s3 + $0x30] sm:$0xff]
        %v489 = vld [vmem:[%s3 + $0x38] sm:$0xff]
        %v490 = vld [vmem:[%s3 + $0x40] sm:$0xff]
        %v491 = vld [vmem:[%s3 + $0x48] sm:$0xff]
        %v492 = vld [vmem:[%s3 + $0x50] sm:$0xff]
        %v493 = vld [vmem:[%s3 + $0x58] sm:$0xff]
        %v494 = vld [vmem:[%s3 + $0x60] sm:$0xff]
        %v495 = vld [vmem:[%s3 + $0x68] sm:$0xff]
        %v496 = vld [vmem:[%s3 + $0x70] sm:$0xff]
        %v497 = vld [vmem:[%s3 + $0x78] sm:$0xff]
        %v498 = vld [vmem:[%s4] sm:$0x1]
        %v500 = vperm.slane %v498, 0
        %502 = vmatpush.msra.mxu0 %v497
        %503 = vmatpush.msra.mxu0 %v496
        %504 = vmatpush.msra.mxu0 %v495
        %505 = vmatpush.msra.mxu0 %v494
        %506 = vmatpush.msra.mxu0 %v493
        %507 = vmatpush.msra.mxu0 %v492
        %508 = vmatpush.msra.mxu0 %v491
        %509 = vmatpush.msra.mxu0 %v490
        %510 = vmatpush.msra.mxu0 %v489
        %511 = vmatpush.msra.mxu0 %v488
        %512 = vmatpush.msra.mxu0 %v487
        %513 = vmatpush.msra.mxu0 %v486
        %514 = vmatpush.msra.mxu0 %v485
        %515 = vmatpush.msra.mxu0 %v484
        %516 = vmatpush.msra.mxu0 %v483
        %517 = vmatpush.msra.mxu0 %v482
        %518 = vmatmul.f32.gmra.mxu0 %v480
        %v519 = vpop.f32.mrf.mxu0
        %v520 = vadd.f32 %v500, %v519
        %521 = vmatmul.f32.gmra.mxu0 %v481
        %v522 = vpop.f32.mrf.mxu0
        %v523 = vadd.f32 %v500, %v522
        %524 = vdwg.mxu0
        %v525 = vmax.f32 %v520, 0.0
        %v526 = vmax.f32 %v523, 0.0
        %v527 = vld [vmem:[%s5] sm:$0xff]
        %v528 = vld [vmem:[%s5 + $0x8] sm:$0xff]
        %v529 = vld [vmem:[%s5 + $0x10] sm:$0xff]
        %v530 = vld [vmem:[%s5 + $0x18] sm:$0xff]
        %v531 = vld [vmem:[%s5 + $0x20] sm:$0xff]
        %v532 = vld [vmem:[%s5 + $0x28] sm:$0xff]
        %v533 = vld [vmem:[%s5 + $0x30] sm:$0xff]
        %v534 = vld [vmem:[%s5 + $0x38] sm:$0xff]
        %v535 = vld [vmem:[%s6] sm:$0x1]
        %v537 = vperm.slane %v535, 0
        %vm539 = vcmask 523264
        %v541 = vsel %vm539, %v525, 0
        %v544 = vsel %vm539, %v526, 0
        %546 = vmatpush.msra.mxu0 0.0
        %547 = vmatpush.msra.mxu0 0.0
        %548 = vmatpush.msra.mxu0 0.0
        %549 = vmatpush.msra.mxu0 0.0
        %550 = vmatpush.msra.mxu0 0.0
        %551 = vmatpush.msra.mxu0 0.0
        %552 = vmatpush.msra.mxu0 0.0
        %553 = vmatpush.msra.mxu0 0.0
        %554 = vmatpush.msra.mxu0 %v534
        %555 = vmatpush.msra.mxu0 %v533
        %556 = vmatpush.msra.mxu0 %v532
        %557 = vmatpush.msra.mxu0 %v531
        %558 = vmatpush.msra.mxu0 %v530
        %559 = vmatpush.msra.mxu0 %v529
        %560 = vmatpush.msra.mxu0 %v528
        %561 = vmatpush.msra.mxu0 %v527
        %562 = vmatmul.f32.gmra.mxu0 %v541
        %v563 = vpop.f32.mrf.mxu0
        %v564 = vadd.f32 %v537, %v563
        %565 = vmatmul.f32.gmra.mxu0 %v544
        %v566 = vpop.f32.mrf.mxu0
        %v567 = vadd.f32 %v537, %v566
        %568 = vdwg.mxu0
        %v569 = vmul.f32 %v564, 1.442695
        %v570 = vpow.pop %v569
        %v571 = vmul.f32 %v567, 1.442695
        %v572 = vpow.pop %v571
        %v573 = vld [vmem:[%s380] sm:$0xff]
        %v574 = vld [vmem:[%s380 + $0x8] sm:$0xff]
        %577 = vrot.lane.b32.xlu0 %v573, 8
        %v578 = vpop.permute.xlu0 %577
        %579 = vrot.lane.b32.xlu0 %v574, 8
        %v580 = vpop.permute.xlu0 %579
        %v583 = vmul.f32 %v570, %v578
        %v584 = vmul.f32 %v572, %v580
        %587 = vrot.lane.b32.xlu0 %v583, 120
        %v588 = vpop.permute.xlu0 %587
        %589 = vrot.lane.b32.xlu0 %v584, 120
        %v590 = vpop.permute.xlu0 %589
        %v593 = vadd.f32 %v564, %v588
        %v594 = vadd.f32 %v567, %v590
        %vm595 = vcmask 64512
        %596 = vst.msk [vmem:[%s386] sm:$0xff] %vm595, %v593
        %597 = vst.msk [vmem:[%s386 + $0x8] sm:$0xff] %vm595, %v594
        %v598 = vmul.f32 %v570, %v570
        %v599 = vmul.f32 %v572, %v572
        %v600 = vmul.f32 %v564, %v564
        %v601 = vmul.f32 %v567, %v567
        %604 = vrot.lane.b32.xlu0 %v600, 8
        %v605 = vpop.permute.xlu0 %604
        %606 = vrot.lane.b32.xlu0 %v601, 8
        %v607 = vpop.permute.xlu0 %606
        %v610 = vadd.f32 %v598, %v605
        %v611 = vadd.f32 %v599, %v607
        %v612 = vsub.f32 %v610, %v564
        %v613 = vsub.f32 %v611, %v567
        %v614 = vsub.f32 %v612, 0.5
        %v615 = vsub.f32 %v613, 0.5
        %618 = vrot.lane.b32.xlu0 %v614, 120
        %v619 = vpop.permute.xlu0 %618
        %620 = vrot.lane.b32.xlu0 %v615, 120
        %v621 = vpop.permute.xlu0 %620
        %v624 = vsel %vm595, %v619, 0.0
        %625 = vadd.xlane.f32.xlu0 %v624
        %v626 = vpop.xlane.xlu0 %625
        %v627 = vsel %vm595, %v621, 0.0
        %628 = vadd.xlane.f32.xlu0 %v627
        %v629 = vpop.xlane.xlu0 %628
        %vm630 = vcmask 7168
        %631 = vst.msk [vmem:[%s392] sm:$0xff] %vm630, %v626
        %632 = vst.msk [vmem:[%s392 + $0x8] sm:$0xff] %vm630, %v629
        %s633 = smul.u32 2, %s24
        %p634 = scmp.lt.s32.totalorder %s633, 7
        %s635 = scalar_select %p634, %s633, 7
        %s636 = smul.addr %s635, 8
        %s637 = scalar_lea.vmem %s8, %s636
        %s638 = smul.u32 2, %s24
        %p639 = scmp.lt.s32.totalorder %s638, 7
        %s640 = scalar_select %p639, %s638, 7
        %s641 = smul.addr %s640, 8
        %s642 = scalar_lea.vmem %s9, %s641
        // Predicated region
        $region57: #{tpu_custom_call.1} parent=51 // pred_check
          %p643 = pneg %p220
        $region58: #{tpu_custom_call.1} parent=51 // pred_check_branch
          %645 = sbr.rel (%p643) target = $region60
        $region59: #{tpu_custom_call.1} parent=51 // pred_region
          %s646 = smul.u32 2, %s24
        $region60: #{tpu_custom_call.1} parent=51 // pred_fallthru
          _
        // Predicated region
        $region61: #{tpu_custom_call.1} parent=51 // pred_check
          %p647 = pneg %p246
        $region62: #{tpu_custom_call.1} parent=51 // pred_check_branch
          %649 = sbr.rel (%p647) target = $region64
        $region63: #{tpu_custom_call.1} parent=51 // pred_region
          %s650 = smul.u32 2, %s24
        $region64: #{tpu_custom_call.1} parent=51 // pred_fallthru
          _
      $region52: #{tpu_custom_call.1} parent=5 // pred_fallthru
        _
      %p651 = scmp.le.s32.totalorder 2, %s19
      // Predicated region
      $region65: #{tpu_custom_call.1} parent=5 // pred_check
        %p652 = pneg %p651
      $region66: #{tpu_custom_call.1} parent=5 // pred_check_branch
        %654 = sbr.rel (%p652) target = $region68
      $region67: #{tpu_custom_call.1} parent=5 // pred_region
        %s655 = ssub.s32 %s19, 2
        // Predicated region
        $region69: #{tpu_custom_call.1} parent=67 // pred_check
          %p656 = pneg %p226
        $region70: #{tpu_custom_call.1} parent=67 // pred_check_branch
          %658 = sbr.rel (%p656) target = $region72
        $region71: #{tpu_custom_call.1} parent=67 // pred_region
          %s659 = smul.u32 2, %s25
          %p660 = scmp.lt.s32.totalorder %s659, 7
          %s661 = scalar_select %p660, %s659, 7
          %s662 = smul.addr %s661, 8
          %s663 = scalar_lea.vmem %s8, %s662
        $region72: #{tpu_custom_call.1} parent=67 // pred_fallthru
          _
        // Predicated region
        $region73: #{tpu_custom_call.1} parent=67 // pred_check
          %p664 = pneg %p252
        $region74: #{tpu_custom_call.1} parent=67 // pred_check_branch
          %666 = sbr.rel (%p664) target = $region76
        $region75: #{tpu_custom_call.1} parent=67 // pred_region
          %s667 = smul.u32 2, %s25
          %p668 = scmp.lt.s32.totalorder %s667, 7
          %s669 = scalar_select %p668, %s667, 7
          %s670 = smul.addr %s669, 8
          %s671 = scalar_lea.vmem %s9, %s670
        $region76: #{tpu_custom_call.1} parent=67 // pred_fallthru
          _
      $region68: #{tpu_custom_call.1} parent=5 // pred_fallthru
        _
    $region6: #{tpu_custom_call.1} parent=1 // loop_footer
      %s23 = sadd.s32 1, %s19
    $region7: #{tpu_custom_call.1} parent=1 // loop_footer_branch
      %18 = sbr.rel target = $region3
    $region8: #{tpu_custom_call.1} parent=1 // loop_exit
      _
    %672 = vsyncpa [#allocation3], 1
    %s673 = scalar_lea.sflag [#allocation3], 1
    %674 = vsyncpa %s673, 1

</llo_original>
